<compile_context>
chip_gen: v7x
topology: tpu7x:2x2x1
jax: 0.10.0
libtpu: 0.0.40
codegen_flags: <defaults>
</compile_context>

<pallas_src>
import functools

import jax
import jax.numpy as jnp
from jax.experimental import pallas as pl
from jax.experimental.pallas import tpu as pltpu


def _convt1x1_sigmoid_kernel(x_ref, w_ref, b_ref, o_ref, *,
                             nb, c_in, c_out, padding, h_out, w_out):
    # x_ref: (nb, c_in, H, W)              VMEM f32  (full, uncropped spatial)
    # w_ref: (c_in, c_out)                 SMEM f32  (PyTorch (Cin,Cout,1,1) squeezed)
    # b_ref: (c_out,)                      SMEM f32
    # o_ref: (nb, c_out, h_out, w_out)     VMEM f32
    hs = slice(padding, padding + h_out)
    ws = slice(padding, padding + w_out)
    for b in range(nb):                       # small, fully unrolled
        # Crop fused here: one offset load of (h_out, w_out) per input channel,
        # reused across all c_out output channels.
        xs = [x_ref[b, c, hs, ws] for c in range(c_in)]
        for o in range(c_out):
            acc = xs[0] * w_ref[0, o] + b_ref[o]      # scalar-broadcast FMA (VPU)
            for c in range(1, c_in):
                acc = acc + xs[c] * w_ref[c, o]
            # Full-tile store: dense in sublanes (no (1, M) masked row stores).
            o_ref[b, o, :, :] = jax.nn.sigmoid(acc)   # exp on EUP


def conv_transpose_1x1_sigmoid(x_nchw, weight, bias, padding=1):
    """x_nchw: (N, C_in, H, W); weight: (C_in, C_out) (PyTorch (Cin,Cout,1,1) squeezed);
    bias: (C_out,). Returns (N, C_out, H-2p, W-2p) float32, matching
    torch.sigmoid(ConvTranspose2d(Cin, Cout, 1, stride=1, padding=p)(x))."""
    n, c_in, h, w = x_nchw.shape
    c_out = weight.shape[1]
    h_out = h - 2 * padding
    w_out = w - 2 * padding
    if h_out <= 0 or w_out <= 0:
        raise ValueError(f"padding={padding} too large for spatial size ({h}, {w})")

    # --- Grid consolidation: pick batch-elements-per-step (nb). ---
    bytes_per_batch = 4 * (c_in * h * w + c_out * h_out * w_out)
    target_block_bytes = 1 << 20                     # ~1 MB per step amortizes overhead
    nb = max(1, min(n, target_block_bytes // max(bytes_per_batch, 1)))
    # Keep >= 2 parallel steps (v7x megacore) once total work is non-trivial.
    if n > 1 and (n // max(nb, 1)) < 2 and n * bytes_per_batch >= (256 << 10):
        nb = max(1, n // 2)
    while n % nb:                                    # nb must divide n
        nb -= 1
    grid = (n // nb,)

    kernel = functools.partial(
        _convt1x1_sigmoid_kernel,
        nb=nb, c_in=c_in, c_out=c_out, padding=padding, h_out=h_out, w_out=w_out)

    return pl.pallas_call(
        kernel,
        out_shape=jax.ShapeDtypeStruct((n, c_out, h_out, w_out), jnp.float32),
        grid=grid,
        in_specs=[
            # Full uncropped spatial block; last two dims equal array dims.
            pl.BlockSpec((nb, c_in, h, w), lambda i: (i, 0, 0, 0)),
            # Tiny weight/bias tables live in SMEM, read as scalars.
            pl.BlockSpec(memory_space=pltpu.MemorySpace.SMEM),
            pl.BlockSpec(memory_space=pltpu.MemorySpace.SMEM),
        ],
        out_specs=pl.BlockSpec((nb, c_out, h_out, w_out), lambda i: (i, 0, 0, 0)),
        compiler_params=pltpu.CompilerParams(
            dimension_semantics=("parallel",)),
    )(x_nchw, weight, bias)


if __name__ == "__main__":
    key = jax.random.PRNGKey(0)
    k_x, k_w, k_b = jax.random.split(key, 3)

    # Small shapes consistent with the module: N=2, C_in=3, C_out=8, H=W=16 -> (2, 8, 14, 14)
    N, C_IN, C_OUT, H, W = 2, 3, 8, 16, 16
    x = jax.random.normal(k_x, (N, C_IN, H, W), dtype=jnp.float32)

    # PyTorch ConvTranspose2d weight shape is (C_in, C_out, 1, 1); store squeezed (C_in, C_out).
    weight = jax.random.normal(k_w, (C_IN, C_OUT), dtype=jnp.float32) * 0.1
    bias = jax.random.normal(k_b, (C_OUT,), dtype=jnp.float32) * 0.1

    y = conv_transpose_1x1_sigmoid(x, weight, bias, padding=1)
    y = jax.block_until_ready(y)

    # Reference in plain JAX (crop + pointwise channel mix + sigmoid).
    x_crop = x[:, :, 1:-1, 1:-1]
    ref = jax.nn.sigmoid(
        jnp.einsum("nchw,co->nohw", x_crop, weight) + bias[None, :, None, None])
    assert y.shape == (N, C_OUT, H - 2, W - 2), y.shape
    assert jnp.allclose(y, ref, atol=1e-5, rtol=1e-5)

    print("KERNEL_OK")
</pallas_src>

<mosaic_0001>
module attributes {stable_mosaic.version = 11 : i64} {
  func.func @_convt1x1_sigmoid_kernel(%arg0: i32, %arg1: memref<2x3x16x16xf32, #tpu.memory_space<vmem>>, %arg2: memref<3x8xf32, #tpu.memory_space<smem>>, %arg3: memref<8xf32, #tpu.memory_space<smem>>, %arg4: memref<2x8x14x14xf32, #tpu.memory_space<vmem>>) attributes {dimension_semantics = [#tpu.dimension_semantics<parallel>], iteration_bounds = array<i64: 1>, scalar_prefetch = 0 : i64, scratch_operands = 0 : i64, tpu.core_type = #tpu.core_type<tc>, window_params = [{transform_indices = @transform_0, window_bounds = array<i64: 2, 3, 16, 16>}, {transform_indices = @transform_1, window_bounds = array<i64: 3, 8>}, {transform_indices = @transform_2, window_bounds = array<i64: 8>}, {transform_indices = @transform_3, window_bounds = array<i64: 2, 8, 14, 14>}]} {
    %c0 = arith.constant 0 : index
    %c0_0 = arith.constant 0 : index
    %c1 = arith.constant 1 : index
    %c1_1 = arith.constant 1 : index
    %0 = vector.load %arg1[%c0, %c0_0, %c1, %c1_1] : memref<2x3x16x16xf32, #tpu.memory_space<vmem>>, vector<1x1x14x14xf32>
    %1 = vector.shape_cast %0 : vector<1x1x14x14xf32> to vector<14x14xf32>
    %c0_2 = arith.constant 0 : index
    %c1_3 = arith.constant 1 : index
    %c1_4 = arith.constant 1 : index
    %c1_5 = arith.constant 1 : index
    %2 = vector.load %arg1[%c0_2, %c1_3, %c1_4, %c1_5] : memref<2x3x16x16xf32, #tpu.memory_space<vmem>>, vector<1x1x14x14xf32>
    %3 = vector.shape_cast %2 : vector<1x1x14x14xf32> to vector<14x14xf32>
    %c0_6 = arith.constant 0 : index
    %c2 = arith.constant 2 : index
    %c1_7 = arith.constant 1 : index
    %c1_8 = arith.constant 1 : index
    %4 = vector.load %arg1[%c0_6, %c2, %c1_7, %c1_8] : memref<2x3x16x16xf32, #tpu.memory_space<vmem>>, vector<1x1x14x14xf32>
    %5 = vector.shape_cast %4 : vector<1x1x14x14xf32> to vector<14x14xf32>
    %c0_9 = arith.constant 0 : index
    %c0_10 = arith.constant 0 : index
    %6 = memref.load %arg2[%c0_9, %c0_10] : memref<3x8xf32, #tpu.memory_space<smem>>
    %7 = vector.broadcast %6 : f32 to vector<14x14xf32>
    %8 = arith.mulf %1, %7 : vector<14x14xf32>
    %c0_11 = arith.constant 0 : index
    %9 = memref.load %arg3[%c0_11] : memref<8xf32, #tpu.memory_space<smem>>
    %10 = vector.broadcast %9 : f32 to vector<14x14xf32>
    %11 = arith.addf %8, %10 : vector<14x14xf32>
    %c1_12 = arith.constant 1 : index
    %c0_13 = arith.constant 0 : index
    %12 = memref.load %arg2[%c1_12, %c0_13] : memref<3x8xf32, #tpu.memory_space<smem>>
    %13 = vector.broadcast %12 : f32 to vector<14x14xf32>
    %14 = arith.mulf %3, %13 : vector<14x14xf32>
    %15 = arith.addf %11, %14 : vector<14x14xf32>
    %c2_14 = arith.constant 2 : index
    %c0_15 = arith.constant 0 : index
    %16 = memref.load %arg2[%c2_14, %c0_15] : memref<3x8xf32, #tpu.memory_space<smem>>
    %17 = vector.broadcast %16 : f32 to vector<14x14xf32>
    %18 = arith.mulf %5, %17 : vector<14x14xf32>
    %19 = arith.addf %15, %18 : vector<14x14xf32>
    %20 = arith.negf %19 : vector<14x14xf32>
    %21 = math.exp %20 : vector<14x14xf32>
    %cst = arith.constant 1.000000e+00 : f32
    %22 = vector.broadcast %cst : f32 to vector<14x14xf32>
    %23 = arith.addf %22, %21 : vector<14x14xf32>
    %24 = arith.divf %22, %23 : vector<14x14xf32>
    %c0_16 = arith.constant 0 : index
    %c0_17 = arith.constant 0 : index
    %c0_18 = arith.constant 0 : index
    %c0_19 = arith.constant 0 : index
    %25 = vector.load %arg4[%c0_16, %c0_17, %c0_18, %c0_19] : memref<2x8x14x14xf32, #tpu.memory_space<vmem>>, vector<1x1x14x14xf32>
    %26 = vector.shape_cast %25 : vector<1x1x14x14xf32> to vector<14x14xf32>
    %27 = vector.shape_cast %24 : vector<14x14xf32> to vector<1x1x14x14xf32>
    tpu.vector_store %arg4[%c0_16, %c0_17, %c0_18, %c0_19], %27 {strides = array<i32>} : memref<2x8x14x14xf32, #tpu.memory_space<vmem>>, vector<1x1x14x14xf32>,
    %c0_20 = arith.constant 0 : index
    %c1_21 = arith.constant 1 : index
    %28 = memref.load %arg2[%c0_20, %c1_21] : memref<3x8xf32, #tpu.memory_space<smem>>
    %29 = vector.broadcast %28 : f32 to vector<14x14xf32>
    %30 = arith.mulf %1, %29 : vector<14x14xf32>
    %c1_22 = arith.constant 1 : index
    %31 = memref.load %arg3[%c1_22] : memref<8xf32, #tpu.memory_space<smem>>
    %32 = vector.broadcast %31 : f32 to vector<14x14xf32>
    %33 = arith.addf %30, %32 : vector<14x14xf32>
    %c1_23 = arith.constant 1 : index
    %c1_24 = arith.constant 1 : index
    %34 = memref.load %arg2[%c1_23, %c1_24] : memref<3x8xf32, #tpu.memory_space<smem>>
    %35 = vector.broadcast %34 : f32 to vector<14x14xf32>
    %36 = arith.mulf %3, %35 : vector<14x14xf32>
    %37 = arith.addf %33, %36 : vector<14x14xf32>
    %c2_25 = arith.constant 2 : index
    %c1_26 = arith.constant 1 : index
    %38 = memref.load %arg2[%c2_25, %c1_26] : memref<3x8xf32, #tpu.memory_space<smem>>
    %39 = vector.broadcast %38 : f32 to vector<14x14xf32>
    %40 = arith.mulf %5, %39 : vector<14x14xf32>
    %41 = arith.addf %37, %40 : vector<14x14xf32>
    %42 = arith.negf %41 : vector<14x14xf32>
    %43 = math.exp %42 : vector<14x14xf32>
    %cst_27 = arith.constant 1.000000e+00 : f32
    %44 = vector.broadcast %cst_27 : f32 to vector<14x14xf32>
    %45 = arith.addf %44, %43 : vector<14x14xf32>
    %46 = arith.divf %44, %45 : vector<14x14xf32>
    %c0_28 = arith.constant 0 : index
    %c1_29 = arith.constant 1 : index
    %c0_30 = arith.constant 0 : index
    %c0_31 = arith.constant 0 : index
    %47 = vector.load %arg4[%c0_28, %c1_29, %c0_30, %c0_31] : memref<2x8x14x14xf32, #tpu.memory_space<vmem>>, vector<1x1x14x14xf32>
    %48 = vector.shape_cast %47 : vector<1x1x14x14xf32> to vector<14x14xf32>
    %49 = vector.shape_cast %46 : vector<14x14xf32> to vector<1x1x14x14xf32>
    tpu.vector_store %arg4[%c0_28, %c1_29, %c0_30, %c0_31], %49 {strides = array<i32>} : memref<2x8x14x14xf32, #tpu.memory_space<vmem>>, vector<1x1x14x14xf32>,
    %c0_32 = arith.constant 0 : index
    %c2_33 = arith.constant 2 : index
    %50 = memref.load %arg2[%c0_32, %c2_33] : memref<3x8xf32, #tpu.memory_space<smem>>
    %51 = vector.broadcast %50 : f32 to vector<14x14xf32>
    %52 = arith.mulf %1, %51 : vector<14x14xf32>
    %c2_34 = arith.constant 2 : index
    %53 = memref.load %arg3[%c2_34] : memref<8xf32, #tpu.memory_space<smem>>
    %54 = vector.broadcast %53 : f32 to vector<14x14xf32>
    %55 = arith.addf %52, %54 : vector<14x14xf32>
    %c1_35 = arith.constant 1 : index
    %c2_36 = arith.constant 2 : index
    %56 = memref.load %arg2[%c1_35, %c2_36] : memref<3x8xf32, #tpu.memory_space<smem>>
    %57 = vector.broadcast %56 : f32 to vector<14x14xf32>
    %58 = arith.mulf %3, %57 : vector<14x14xf32>
    %59 = arith.addf %55, %58 : vector<14x14xf32>
    %c2_37 = arith.constant 2 : index
    %c2_38 = arith.constant 2 : index
    %60 = memref.load %arg2[%c2_37, %c2_38] : memref<3x8xf32, #tpu.memory_space<smem>>
    %61 = vector.broadcast %60 : f32 to vector<14x14xf32>
    %62 = arith.mulf %5, %61 : vector<14x14xf32>
    %63 = arith.addf %59, %62 : vector<14x14xf32>
    %64 = arith.negf %63 : vector<14x14xf32>
    %65 = math.exp %64 : vector<14x14xf32>
    %cst_39 = arith.constant 1.000000e+00 : f32
    %66 = vector.broadcast %cst_39 : f32 to vector<14x14xf32>
    %67 = arith.addf %66, %65 : vector<14x14xf32>
    %68 = arith.divf %66, %67 : vector<14x14xf32>
    %c0_40 = arith.constant 0 : index
    %c2_41 = arith.constant 2 : index
    %c0_42 = arith.constant 0 : index
    %c0_43 = arith.constant 0 : index
    %69 = vector.load %arg4[%c0_40, %c2_41, %c0_42, %c0_43] : memref<2x8x14x14xf32, #tpu.memory_space<vmem>>, vector<1x1x14x14xf32>
    %70 = vector.shape_cast %69 : vector<1x1x14x14xf32> to vector<14x14xf32>
    %71 = vector.shape_cast %68 : vector<14x14xf32> to vector<1x1x14x14xf32>
    tpu.vector_store %arg4[%c0_40, %c2_41, %c0_42, %c0_43], %71 {strides = array<i32>} : memref<2x8x14x14xf32, #tpu.memory_space<vmem>>, vector<1x1x14x14xf32>,
    %c0_44 = arith.constant 0 : index
    %c3 = arith.constant 3 : index
    %72 = memref.load %arg2[%c0_44, %c3] : memref<3x8xf32, #tpu.memory_space<smem>>
    %73 = vector.broadcast %72 : f32 to vector<14x14xf32>
    %74 = arith.mulf %1, %73 : vector<14x14xf32>
    %c3_45 = arith.constant 3 : index
    %75 = memref.load %arg3[%c3_45] : memref<8xf32, #tpu.memory_space<smem>>
    %76 = vector.broadcast %75 : f32 to vector<14x14xf32>
    %77 = arith.addf %74, %76 : vector<14x14xf32>
    %c1_46 = arith.constant 1 : index
    %c3_47 = arith.constant 3 : index
    %78 = memref.load %arg2[%c1_46, %c3_47] : memref<3x8xf32, #tpu.memory_space<smem>>
    %79 = vector.broadcast %78 : f32 to vector<14x14xf32>
    %80 = arith.mulf %3, %79 : vector<14x14xf32>
    %81 = arith.addf %77, %80 : vector<14x14xf32>
    %c2_48 = arith.constant 2 : index
    %c3_49 = arith.constant 3 : index
    %82 = memref.load %arg2[%c2_48, %c3_49] : memref<3x8xf32, #tpu.memory_space<smem>>
    %83 = vector.broadcast %82 : f32 to vector<14x14xf32>
    %84 = arith.mulf %5, %83 : vector<14x14xf32>
    %85 = arith.addf %81, %84 : vector<14x14xf32>
    %86 = arith.negf %85 : vector<14x14xf32>
    %87 = math.exp %86 : vector<14x14xf32>
    %cst_50 = arith.constant 1.000000e+00 : f32
    %88 = vector.broadcast %cst_50 : f32 to vector<14x14xf32>
    %89 = arith.addf %88, %87 : vector<14x14xf32>
    %90 = arith.divf %88, %89 : vector<14x14xf32>
    %c0_51 = arith.constant 0 : index
    %c3_52 = arith.constant 3 : index
    %c0_53 = arith.constant 0 : index
    %c0_54 = arith.constant 0 : index
    %91 = vector.load %arg4[%c0_51, %c3_52, %c0_53, %c0_54] : memref<2x8x14x14xf32, #tpu.memory_space<vmem>>, vector<1x1x14x14xf32>
    %92 = vector.shape_cast %91 : vector<1x1x14x14xf32> to vector<14x14xf32>
    %93 = vector.shape_cast %90 : vector<14x14xf32> to vector<1x1x14x14xf32>
    tpu.vector_store %arg4[%c0_51, %c3_52, %c0_53, %c0_54], %93 {strides = array<i32>} : memref<2x8x14x14xf32, #tpu.memory_space<vmem>>, vector<1x1x14x14xf32>,
    %c0_55 = arith.constant 0 : index
    %c4 = arith.constant 4 : index
    %94 = memref.load %arg2[%c0_55, %c4] : memref<3x8xf32, #tpu.memory_space<smem>>
    %95 = vector.broadcast %94 : f32 to vector<14x14xf32>
    %96 = arith.mulf %1, %95 : vector<14x14xf32>
    %c4_56 = arith.constant 4 : index
    %97 = memref.load %arg3[%c4_56] : memref<8xf32, #tpu.memory_space<smem>>
    %98 = vector.broadcast %97 : f32 to vector<14x14xf32>
    %99 = arith.addf %96, %98 : vector<14x14xf32>
    %c1_57 = arith.constant 1 : index
    %c4_58 = arith.constant 4 : index
    %100 = memref.load %arg2[%c1_57, %c4_58] : memref<3x8xf32, #tpu.memory_space<smem>>
    %101 = vector.broadcast %100 : f32 to vector<14x14xf32>
    %102 = arith.mulf %3, %101 : vector<14x14xf32>
    %103 = arith.addf %99, %102 : vector<14x14xf32>
    %c2_59 = arith.constant 2 : index
    %c4_60 = arith.constant 4 : index
    %104 = memref.load %arg2[%c2_59, %c4_60] : memref<3x8xf32, #tpu.memory_space<smem>>
    %105 = vector.broadcast %104 : f32 to vector<14x14xf32>
    %106 = arith.mulf %5, %105 : vector<14x14xf32>
    %107 = arith.addf %103, %106 : vector<14x14xf32>
    %108 = arith.negf %107 : vector<14x14xf32>
    %109 = math.exp %108 : vector<14x14xf32>
    %cst_61 = arith.constant 1.000000e+00 : f32
    %110 = vector.broadcast %cst_61 : f32 to vector<14x14xf32>
    %111 = arith.addf %110, %109 : vector<14x14xf32>
    %112 = arith.divf %110, %111 : vector<14x14xf32>
    %c0_62 = arith.constant 0 : index
    %c4_63 = arith.constant 4 : index
    %c0_64 = arith.constant 0 : index
    %c0_65 = arith.constant 0 : index
    %113 = vector.load %arg4[%c0_62, %c4_63, %c0_64, %c0_65] : memref<2x8x14x14xf32, #tpu.memory_space<vmem>>, vector<1x1x14x14xf32>
    %114 = vector.shape_cast %113 : vector<1x1x14x14xf32> to vector<14x14xf32>
    %115 = vector.shape_cast %112 : vector<14x14xf32> to vector<1x1x14x14xf32>
    tpu.vector_store %arg4[%c0_62, %c4_63, %c0_64, %c0_65], %115 {strides = array<i32>} : memref<2x8x14x14xf32, #tpu.memory_space<vmem>>, vector<1x1x14x14xf32>,
    %c0_66 = arith.constant 0 : index
    %c5 = arith.constant 5 : index
    %116 = memref.load %arg2[%c0_66, %c5] : memref<3x8xf32, #tpu.memory_space<smem>>
    %117 = vector.broadcast %116 : f32 to vector<14x14xf32>
    %118 = arith.mulf %1, %117 : vector<14x14xf32>
    %c5_67 = arith.constant 5 : index
    %119 = memref.load %arg3[%c5_67] : memref<8xf32, #tpu.memory_space<smem>>
    %120 = vector.broadcast %119 : f32 to vector<14x14xf32>
    %121 = arith.addf %118, %120 : vector<14x14xf32>
    %c1_68 = arith.constant 1 : index
    %c5_69 = arith.constant 5 : index
    %122 = memref.load %arg2[%c1_68, %c5_69] : memref<3x8xf32, #tpu.memory_space<smem>>
    %123 = vector.broadcast %122 : f32 to vector<14x14xf32>
    %124 = arith.mulf %3, %123 : vector<14x14xf32>
    %125 = arith.addf %121, %124 : vector<14x14xf32>
    %c2_70 = arith.constant 2 : index
    %c5_71 = arith.constant 5 : index
    %126 = memref.load %arg2[%c2_70, %c5_71] : memref<3x8xf32, #tpu.memory_space<smem>>
    %127 = vector.broadcast %126 : f32 to vector<14x14xf32>
    %128 = arith.mulf %5, %127 : vector<14x14xf32>
    %129 = arith.addf %125, %128 : vector<14x14xf32>
    %130 = arith.negf %129 : vector<14x14xf32>
    %131 = math.exp %130 : vector<14x14xf32>
    %cst_72 = arith.constant 1.000000e+00 : f32
    %132 = vector.broadcast %cst_72 : f32 to vector<14x14xf32>
    %133 = arith.addf %132, %131 : vector<14x14xf32>
    %134 = arith.divf %132, %133 : vector<14x14xf32>
    %c0_73 = arith.constant 0 : index
    %c5_74 = arith.constant 5 : index
    %c0_75 = arith.constant 0 : index
    %c0_76 = arith.constant 0 : index
    %135 = vector.load %arg4[%c0_73, %c5_74, %c0_75, %c0_76] : memref<2x8x14x14xf32, #tpu.memory_space<vmem>>, vector<1x1x14x14xf32>
    %136 = vector.shape_cast %135 : vector<1x1x14x14xf32> to vector<14x14xf32>
    %137 = vector.shape_cast %134 : vector<14x14xf32> to vector<1x1x14x14xf32>
    tpu.vector_store %arg4[%c0_73, %c5_74, %c0_75, %c0_76], %137 {strides = array<i32>} : memref<2x8x14x14xf32, #tpu.memory_space<vmem>>, vector<1x1x14x14xf32>,
    %c0_77 = arith.constant 0 : index
    %c6 = arith.constant 6 : index
    %138 = memref.load %arg2[%c0_77, %c6] : memref<3x8xf32, #tpu.memory_space<smem>>
    %139 = vector.broadcast %138 : f32 to vector<14x14xf32>
    %140 = arith.mulf %1, %139 : vector<14x14xf32>
    %c6_78 = arith.constant 6 : index
    %141 = memref.load %arg3[%c6_78] : memref<8xf32, #tpu.memory_space<smem>>
    %142 = vector.broadcast %141 : f32 to vector<14x14xf32>
    %143 = arith.addf %140, %142 : vector<14x14xf32>
    %c1_79 = arith.constant 1 : index
    %c6_80 = arith.constant 6 : index
    %144 = memref.load %arg2[%c1_79, %c6_80] : memref<3x8xf32, #tpu.memory_space<smem>>
    %145 = vector.broadcast %144 : f32 to vector<14x14xf32>
    %146 = arith.mulf %3, %145 : vector<14x14xf32>
    %147 = arith.addf %143, %146 : vector<14x14xf32>
    %c2_81 = arith.constant 2 : index
    %c6_82 = arith.constant 6 : index
    %148 = memref.load %arg2[%c2_81, %c6_82] : memref<3x8xf32, #tpu.memory_space<smem>>
    %149 = vector.broadcast %148 : f32 to vector<14x14xf32>
    %150 = arith.mulf %5, %149 : vector<14x14xf32>
    %151 = arith.addf %147, %150 : vector<14x14xf32>
    %152 = arith.negf %151 : vector<14x14xf32>
    %153 = math.exp %152 : vector<14x14xf32>
    %cst_83 = arith.constant 1.000000e+00 : f32
    %154 = vector.broadcast %cst_83 : f32 to vector<14x14xf32>
    %155 = arith.addf %154, %153 : vector<14x14xf32>
    %156 = arith.divf %154, %155 : vector<14x14xf32>
    %c0_84 = arith.constant 0 : index
    %c6_85 = arith.constant 6 : index
    %c0_86 = arith.constant 0 : index
    %c0_87 = arith.constant 0 : index
    %157 = vector.load %arg4[%c0_84, %c6_85, %c0_86, %c0_87] : memref<2x8x14x14xf32, #tpu.memory_space<vmem>>, vector<1x1x14x14xf32>
    %158 = vector.shape_cast %157 : vector<1x1x14x14xf32> to vector<14x14xf32>
    %159 = vector.shape_cast %156 : vector<14x14xf32> to vector<1x1x14x14xf32>
    tpu.vector_store %arg4[%c0_84, %c6_85, %c0_86, %c0_87], %159 {strides = array<i32>} : memref<2x8x14x14xf32, #tpu.memory_space<vmem>>, vector<1x1x14x14xf32>,
    %c0_88 = arith.constant 0 : index
    %c7 = arith.constant 7 : index
    %160 = memref.load %arg2[%c0_88, %c7] : memref<3x8xf32, #tpu.memory_space<smem>>
    %161 = vector.broadcast %160 : f32 to vector<14x14xf32>
    %162 = arith.mulf %1, %161 : vector<14x14xf32>
    %c7_89 = arith.constant 7 : index
    %163 = memref.load %arg3[%c7_89] : memref<8xf32, #tpu.memory_space<smem>>
    %164 = vector.broadcast %163 : f32 to vector<14x14xf32>
    %165 = arith.addf %162, %164 : vector<14x14xf32>
    %c1_90 = arith.constant 1 : index
    %c7_91 = arith.constant 7 : index
    %166 = memref.load %arg2[%c1_90, %c7_91] : memref<3x8xf32, #tpu.memory_space<smem>>
    %167 = vector.broadcast %166 : f32 to vector<14x14xf32>
    %168 = arith.mulf %3, %167 : vector<14x14xf32>
    %169 = arith.addf %165, %168 : vector<14x14xf32>
    %c2_92 = arith.constant 2 : index
    %c7_93 = arith.constant 7 : index
    %170 = memref.load %arg2[%c2_92, %c7_93] : memref<3x8xf32, #tpu.memory_space<smem>>
    %171 = vector.broadcast %170 : f32 to vector<14x14xf32>
    %172 = arith.mulf %5, %171 : vector<14x14xf32>
    %173 = arith.addf %169, %172 : vector<14x14xf32>
    %174 = arith.negf %173 : vector<14x14xf32>
    %175 = math.exp %174 : vector<14x14xf32>
    %cst_94 = arith.constant 1.000000e+00 : f32
    %176 = vector.broadcast %cst_94 : f32 to vector<14x14xf32>
    %177 = arith.addf %176, %175 : vector<14x14xf32>
    %178 = arith.divf %176, %177 : vector<14x14xf32>
    %c0_95 = arith.constant 0 : index
    %c7_96 = arith.constant 7 : index
    %c0_97 = arith.constant 0 : index
    %c0_98 = arith.constant 0 : index
    %179 = vector.load %arg4[%c0_95, %c7_96, %c0_97, %c0_98] : memref<2x8x14x14xf32, #tpu.memory_space<vmem>>, vector<1x1x14x14xf32>
    %180 = vector.shape_cast %179 : vector<1x1x14x14xf32> to vector<14x14xf32>
    %181 = vector.shape_cast %178 : vector<14x14xf32> to vector<1x1x14x14xf32>
    tpu.vector_store %arg4[%c0_95, %c7_96, %c0_97, %c0_98], %181 {strides = array<i32>} : memref<2x8x14x14xf32, #tpu.memory_space<vmem>>, vector<1x1x14x14xf32>,
    %c1_99 = arith.constant 1 : index
    %c0_100 = arith.constant 0 : index
    %c1_101 = arith.constant 1 : index
    %c1_102 = arith.constant 1 : index
    %182 = vector.load %arg1[%c1_99, %c0_100, %c1_101, %c1_102] : memref<2x3x16x16xf32, #tpu.memory_space<vmem>>, vector<1x1x14x14xf32>
    %183 = vector.shape_cast %182 : vector<1x1x14x14xf32> to vector<14x14xf32>
    %c1_103 = arith.constant 1 : index
    %c1_104 = arith.constant 1 : index
    %c1_105 = arith.constant 1 : index
    %c1_106 = arith.constant 1 : index
    %184 = vector.load %arg1[%c1_103, %c1_104, %c1_105, %c1_106] : memref<2x3x16x16xf32, #tpu.memory_space<vmem>>, vector<1x1x14x14xf32>
    %185 = vector.shape_cast %184 : vector<1x1x14x14xf32> to vector<14x14xf32>
    %c1_107 = arith.constant 1 : index
    %c2_108 = arith.constant 2 : index
    %c1_109 = arith.constant 1 : index
    %c1_110 = arith.constant 1 : index
    %186 = vector.load %arg1[%c1_107, %c2_108, %c1_109, %c1_110] : memref<2x3x16x16xf32, #tpu.memory_space<vmem>>, vector<1x1x14x14xf32>
    %187 = vector.shape_cast %186 : vector<1x1x14x14xf32> to vector<14x14xf32>
    %c0_111 = arith.constant 0 : index
    %c0_112 = arith.constant 0 : index
    %188 = memref.load %arg2[%c0_111, %c0_112] : memref<3x8xf32, #tpu.memory_space<smem>>
    %189 = vector.broadcast %188 : f32 to vector<14x14xf32>
    %190 = arith.mulf %183, %189 : vector<14x14xf32>
    %c0_113 = arith.constant 0 : index
    %191 = memref.load %arg3[%c0_113] : memref<8xf32, #tpu.memory_space<smem>>
    %192 = vector.broadcast %191 : f32 to vector<14x14xf32>
    %193 = arith.addf %190, %192 : vector<14x14xf32>
    %c1_114 = arith.constant 1 : index
    %c0_115 = arith.constant 0 : index
    %194 = memref.load %arg2[%c1_114, %c0_115] : memref<3x8xf32, #tpu.memory_space<smem>>
    %195 = vector.broadcast %194 : f32 to vector<14x14xf32>
    %196 = arith.mulf %185, %195 : vector<14x14xf32>
    %197 = arith.addf %193, %196 : vector<14x14xf32>
    %c2_116 = arith.constant 2 : index
    %c0_117 = arith.constant 0 : index
    %198 = memref.load %arg2[%c2_116, %c0_117] : memref<3x8xf32, #tpu.memory_space<smem>>
    %199 = vector.broadcast %198 : f32 to vector<14x14xf32>
    %200 = arith.mulf %187, %199 : vector<14x14xf32>
    %201 = arith.addf %197, %200 : vector<14x14xf32>
    %202 = arith.negf %201 : vector<14x14xf32>
    %203 = math.exp %202 : vector<14x14xf32>
    %cst_118 = arith.constant 1.000000e+00 : f32
    %204 = vector.broadcast %cst_118 : f32 to vector<14x14xf32>
    %205 = arith.addf %204, %203 : vector<14x14xf32>
    %206 = arith.divf %204, %205 : vector<14x14xf32>
    %c1_119 = arith.constant 1 : index
    %c0_120 = arith.constant 0 : index
    %c0_121 = arith.constant 0 : index
    %c0_122 = arith.constant 0 : index
    %207 = vector.load %arg4[%c1_119, %c0_120, %c0_121, %c0_122] : memref<2x8x14x14xf32, #tpu.memory_space<vmem>>, vector<1x1x14x14xf32>
    %208 = vector.shape_cast %207 : vector<1x1x14x14xf32> to vector<14x14xf32>
    %209 = vector.shape_cast %206 : vector<14x14xf32> to vector<1x1x14x14xf32>
    tpu.vector_store %arg4[%c1_119, %c0_120, %c0_121, %c0_122], %209 {strides = array<i32>} : memref<2x8x14x14xf32, #tpu.memory_space<vmem>>, vector<1x1x14x14xf32>,
    %c0_123 = arith.constant 0 : index
    %c1_124 = arith.constant 1 : index
    %210 = memref.load %arg2[%c0_123, %c1_124] : memref<3x8xf32, #tpu.memory_space<smem>>
    %211 = vector.broadcast %210 : f32 to vector<14x14xf32>
    %212 = arith.mulf %183, %211 : vector<14x14xf32>
    %c1_125 = arith.constant 1 : index
    %213 = memref.load %arg3[%c1_125] : memref<8xf32, #tpu.memory_space<smem>>
    %214 = vector.broadcast %213 : f32 to vector<14x14xf32>
    %215 = arith.addf %212, %214 : vector<14x14xf32>
    %c1_126 = arith.constant 1 : index
    %c1_127 = arith.constant 1 : index
    %216 = memref.load %arg2[%c1_126, %c1_127] : memref<3x8xf32, #tpu.memory_space<smem>>
    %217 = vector.broadcast %216 : f32 to vector<14x14xf32>
    %218 = arith.mulf %185, %217 : vector<14x14xf32>
    %219 = arith.addf %215, %218 : vector<14x14xf32>
    %c2_128 = arith.constant 2 : index
    %c1_129 = arith.constant 1 : index
    %220 = memref.load %arg2[%c2_128, %c1_129] : memref<3x8xf32, #tpu.memory_space<smem>>
    %221 = vector.broadcast %220 : f32 to vector<14x14xf32>
    %222 = arith.mulf %187, %221 : vector<14x14xf32>
    %223 = arith.addf %219, %222 : vector<14x14xf32>
    %224 = arith.negf %223 : vector<14x14xf32>
    %225 = math.exp %224 : vector<14x14xf32>
    %cst_130 = arith.constant 1.000000e+00 : f32
    %226 = vector.broadcast %cst_130 : f32 to vector<14x14xf32>
    %227 = arith.addf %226, %225 : vector<14x14xf32>
    %228 = arith.divf %226, %227 : vector<14x14xf32>
    %c1_131 = arith.constant 1 : index
    %c1_132 = arith.constant 1 : index
    %c0_133 = arith.constant 0 : index
    %c0_134 = arith.constant 0 : index
    %229 = vector.load %arg4[%c1_131, %c1_132, %c0_133, %c0_134] : memref<2x8x14x14xf32, #tpu.memory_space<vmem>>, vector<1x1x14x14xf32>
    %230 = vector.shape_cast %229 : vector<1x1x14x14xf32> to vector<14x14xf32>
    %231 = vector.shape_cast %228 : vector<14x14xf32> to vector<1x1x14x14xf32>
    tpu.vector_store %arg4[%c1_131, %c1_132, %c0_133, %c0_134], %231 {strides = array<i32>} : memref<2x8x14x14xf32, #tpu.memory_space<vmem>>, vector<1x1x14x14xf32>,
    %c0_135 = arith.constant 0 : index
    %c2_136 = arith.constant 2 : index
    %232 = memref.load %arg2[%c0_135, %c2_136] : memref<3x8xf32, #tpu.memory_space<smem>>
    %233 = vector.broadcast %232 : f32 to vector<14x14xf32>
    %234 = arith.mulf %183, %233 : vector<14x14xf32>
    %c2_137 = arith.constant 2 : index
    %235 = memref.load %arg3[%c2_137] : memref<8xf32, #tpu.memory_space<smem>>
    %236 = vector.broadcast %235 : f32 to vector<14x14xf32>
    %237 = arith.addf %234, %236 : vector<14x14xf32>
    %c1_138 = arith.constant 1 : index
    %c2_139 = arith.constant 2 : index
    %238 = memref.load %arg2[%c1_138, %c2_139] : memref<3x8xf32, #tpu.memory_space<smem>>
    %239 = vector.broadcast %238 : f32 to vector<14x14xf32>
    %240 = arith.mulf %185, %239 : vector<14x14xf32>
    %241 = arith.addf %237, %240 : vector<14x14xf32>
    %c2_140 = arith.constant 2 : index
    %c2_141 = arith.constant 2 : index
    %242 = memref.load %arg2[%c2_140, %c2_141] : memref<3x8xf32, #tpu.memory_space<smem>>
    %243 = vector.broadcast %242 : f32 to vector<14x14xf32>
    %244 = arith.mulf %187, %243 : vector<14x14xf32>
    %245 = arith.addf %241, %244 : vector<14x14xf32>
    %246 = arith.negf %245 : vector<14x14xf32>
    %247 = math.exp %246 : vector<14x14xf32>
    %cst_142 = arith.constant 1.000000e+00 : f32
    %248 = vector.broadcast %cst_142 : f32 to vector<14x14xf32>
    %249 = arith.addf %248, %247 : vector<14x14xf32>
    %250 = arith.divf %248, %249 : vector<14x14xf32>
    %c1_143 = arith.constant 1 : index
    %c2_144 = arith.constant 2 : index
    %c0_145 = arith.constant 0 : index
    %c0_146 = arith.constant 0 : index
    %251 = vector.load %arg4[%c1_143, %c2_144, %c0_145, %c0_146] : memref<2x8x14x14xf32, #tpu.memory_space<vmem>>, vector<1x1x14x14xf32>
    %252 = vector.shape_cast %251 : vector<1x1x14x14xf32> to vector<14x14xf32>
    %253 = vector.shape_cast %250 : vector<14x14xf32> to vector<1x1x14x14xf32>
    tpu.vector_store %arg4[%c1_143, %c2_144, %c0_145, %c0_146], %253 {strides = array<i32>} : memref<2x8x14x14xf32, #tpu.memory_space<vmem>>, vector<1x1x14x14xf32>,
    %c0_147 = arith.constant 0 : index
    %c3_148 = arith.constant 3 : index
    %254 = memref.load %arg2[%c0_147, %c3_148] : memref<3x8xf32, #tpu.memory_space<smem>>
    %255 = vector.broadcast %254 : f32 to vector<14x14xf32>
    %256 = arith.mulf %183, %255 : vector<14x14xf32>
    %c3_149 = arith.constant 3 : index
    %257 = memref.load %arg3[%c3_149] : memref<8xf32, #tpu.memory_space<smem>>
    %258 = vector.broadcast %257 : f32 to vector<14x14xf32>
    %259 = arith.addf %256, %258 : vector<14x14xf32>
    %c1_150 = arith.constant 1 : index
    %c3_151 = arith.constant 3 : index
    %260 = memref.load %arg2[%c1_150, %c3_151] : memref<3x8xf32, #tpu.memory_space<smem>>
    %261 = vector.broadcast %260 : f32 to vector<14x14xf32>
    %262 = arith.mulf %185, %261 : vector<14x14xf32>
    %263 = arith.addf %259, %262 : vector<14x14xf32>
    %c2_152 = arith.constant 2 : index
    %c3_153 = arith.constant 3 : index
    %264 = memref.load %arg2[%c2_152, %c3_153] : memref<3x8xf32, #tpu.memory_space<smem>>
    %265 = vector.broadcast %264 : f32 to vector<14x14xf32>
    %266 = arith.mulf %187, %265 : vector<14x14xf32>
    %267 = arith.addf %263, %266 : vector<14x14xf32>
    %268 = arith.negf %267 : vector<14x14xf32>
    %269 = math.exp %268 : vector<14x14xf32>
    %cst_154 = arith.constant 1.000000e+00 : f32
    %270 = vector.broadcast %cst_154 : f32 to vector<14x14xf32>
    %271 = arith.addf %270, %269 : vector<14x14xf32>
    %272 = arith.divf %270, %271 : vector<14x14xf32>
    %c1_155 = arith.constant 1 : index
    %c3_156 = arith.constant 3 : index
    %c0_157 = arith.constant 0 : index
    %c0_158 = arith.constant 0 : index
    %273 = vector.load %arg4[%c1_155, %c3_156, %c0_157, %c0_158] : memref<2x8x14x14xf32, #tpu.memory_space<vmem>>, vector<1x1x14x14xf32>
    %274 = vector.shape_cast %273 : vector<1x1x14x14xf32> to vector<14x14xf32>
    %275 = vector.shape_cast %272 : vector<14x14xf32> to vector<1x1x14x14xf32>
    tpu.vector_store %arg4[%c1_155, %c3_156, %c0_157, %c0_158], %275 {strides = array<i32>} : memref<2x8x14x14xf32, #tpu.memory_space<vmem>>, vector<1x1x14x14xf32>,
    %c0_159 = arith.constant 0 : index
    %c4_160 = arith.constant 4 : index
    %276 = memref.load %arg2[%c0_159, %c4_160] : memref<3x8xf32, #tpu.memory_space<smem>>
    %277 = vector.broadcast %276 : f32 to vector<14x14xf32>
    %278 = arith.mulf %183, %277 : vector<14x14xf32>
    %c4_161 = arith.constant 4 : index
    %279 = memref.load %arg3[%c4_161] : memref<8xf32, #tpu.memory_space<smem>>
    %280 = vector.broadcast %279 : f32 to vector<14x14xf32>
    %281 = arith.addf %278, %280 : vector<14x14xf32>
    %c1_162 = arith.constant 1 : index
    %c4_163 = arith.constant 4 : index
    %282 = memref.load %arg2[%c1_162, %c4_163] : memref<3x8xf32, #tpu.memory_space<smem>>
    %283 = vector.broadcast %282 : f32 to vector<14x14xf32>
    %284 = arith.mulf %185, %283 : vector<14x14xf32>
    %285 = arith.addf %281, %284 : vector<14x14xf32>
    %c2_164 = arith.constant 2 : index
    %c4_165 = arith.constant 4 : index
    %286 = memref.load %arg2[%c2_164, %c4_165] : memref<3x8xf32, #tpu.memory_space<smem>>
    %287 = vector.broadcast %286 : f32 to vector<14x14xf32>
    %288 = arith.mulf %187, %287 : vector<14x14xf32>
    %289 = arith.addf %285, %288 : vector<14x14xf32>
    %290 = arith.negf %289 : vector<14x14xf32>
    %291 = math.exp %290 : vector<14x14xf32>
    %cst_166 = arith.constant 1.000000e+00 : f32
    %292 = vector.broadcast %cst_166 : f32 to vector<14x14xf32>
    %293 = arith.addf %292, %291 : vector<14x14xf32>
    %294 = arith.divf %292, %293 : vector<14x14xf32>
    %c1_167 = arith.constant 1 : index
    %c4_168 = arith.constant 4 : index
    %c0_169 = arith.constant 0 : index
    %c0_170 = arith.constant 0 : index
    %295 = vector.load %arg4[%c1_167, %c4_168, %c0_169, %c0_170] : memref<2x8x14x14xf32, #tpu.memory_space<vmem>>, vector<1x1x14x14xf32>
    %296 = vector.shape_cast %295 : vector<1x1x14x14xf32> to vector<14x14xf32>
    %297 = vector.shape_cast %294 : vector<14x14xf32> to vector<1x1x14x14xf32>
    tpu.vector_store %arg4[%c1_167, %c4_168, %c0_169, %c0_170], %297 {strides = array<i32>} : memref<2x8x14x14xf32, #tpu.memory_space<vmem>>, vector<1x1x14x14xf32>,
    %c0_171 = arith.constant 0 : index
    %c5_172 = arith.constant 5 : index
    %298 = memref.load %arg2[%c0_171, %c5_172] : memref<3x8xf32, #tpu.memory_space<smem>>
    %299 = vector.broadcast %298 : f32 to vector<14x14xf32>
    %300 = arith.mulf %183, %299 : vector<14x14xf32>
    %c5_173 = arith.constant 5 : index
    %301 = memref.load %arg3[%c5_173] : memref<8xf32, #tpu.memory_space<smem>>
    %302 = vector.broadcast %301 : f32 to vector<14x14xf32>
    %303 = arith.addf %300, %302 : vector<14x14xf32>
    %c1_174 = arith.constant 1 : index
    %c5_175 = arith.constant 5 : index
    %304 = memref.load %arg2[%c1_174, %c5_175] : memref<3x8xf32, #tpu.memory_space<smem>>
    %305 = vector.broadcast %304 : f32 to vector<14x14xf32>
    %306 = arith.mulf %185, %305 : vector<14x14xf32>
    %307 = arith.addf %303, %306 : vector<14x14xf32>
    %c2_176 = arith.constant 2 : index
    %c5_177 = arith.constant 5 : index
    %308 = memref.load %arg2[%c2_176, %c5_177] : memref<3x8xf32, #tpu.memory_space<smem>>
    %309 = vector.broadcast %308 : f32 to vector<14x14xf32>
    %310 = arith.mulf %187, %309 : vector<14x14xf32>
    %311 = arith.addf %307, %310 : vector<14x14xf32>
    %312 = arith.negf %311 : vector<14x14xf32>
    %313 = math.exp %312 : vector<14x14xf32>
    %cst_178 = arith.constant 1.000000e+00 : f32
    %314 = vector.broadcast %cst_178 : f32 to vector<14x14xf32>
    %315 = arith.addf %314, %313 : vector<14x14xf32>
    %316 = arith.divf %314, %315 : vector<14x14xf32>
    %c1_179 = arith.constant 1 : index
    %c5_180 = arith.constant 5 : index
    %c0_181 = arith.constant 0 : index
    %c0_182 = arith.constant 0 : index
    %317 = vector.load %arg4[%c1_179, %c5_180, %c0_181, %c0_182] : memref<2x8x14x14xf32, #tpu.memory_space<vmem>>, vector<1x1x14x14xf32>
    %318 = vector.shape_cast %317 : vector<1x1x14x14xf32> to vector<14x14xf32>
    %319 = vector.shape_cast %316 : vector<14x14xf32> to vector<1x1x14x14xf32>
    tpu.vector_store %arg4[%c1_179, %c5_180, %c0_181, %c0_182], %319 {strides = array<i32>} : memref<2x8x14x14xf32, #tpu.memory_space<vmem>>, vector<1x1x14x14xf32>,
    %c0_183 = arith.constant 0 : index
    %c6_184 = arith.constant 6 : index
    %320 = memref.load %arg2[%c0_183, %c6_184] : memref<3x8xf32, #tpu.memory_space<smem>>
    %321 = vector.broadcast %320 : f32 to vector<14x14xf32>
    %322 = arith.mulf %183, %321 : vector<14x14xf32>
    %c6_185 = arith.constant 6 : index
    %323 = memref.load %arg3[%c6_185] : memref<8xf32, #tpu.memory_space<smem>>
    %324 = vector.broadcast %323 : f32 to vector<14x14xf32>
    %325 = arith.addf %322, %324 : vector<14x14xf32>
    %c1_186 = arith.constant 1 : index
    %c6_187 = arith.constant 6 : index
    %326 = memref.load %arg2[%c1_186, %c6_187] : memref<3x8xf32, #tpu.memory_space<smem>>
    %327 = vector.broadcast %326 : f32 to vector<14x14xf32>
    %328 = arith.mulf %185, %327 : vector<14x14xf32>
    %329 = arith.addf %325, %328 : vector<14x14xf32>
    %c2_188 = arith.constant 2 : index
    %c6_189 = arith.constant 6 : index
    %330 = memref.load %arg2[%c2_188, %c6_189] : memref<3x8xf32, #tpu.memory_space<smem>>
    %331 = vector.broadcast %330 : f32 to vector<14x14xf32>
    %332 = arith.mulf %187, %331 : vector<14x14xf32>
    %333 = arith.addf %329, %332 : vector<14x14xf32>
    %334 = arith.negf %333 : vector<14x14xf32>
    %335 = math.exp %334 : vector<14x14xf32>
    %cst_190 = arith.constant 1.000000e+00 : f32
    %336 = vector.broadcast %cst_190 : f32 to vector<14x14xf32>
    %337 = arith.addf %336, %335 : vector<14x14xf32>
    %338 = arith.divf %336, %337 : vector<14x14xf32>
    %c1_191 = arith.constant 1 : index
    %c6_192 = arith.constant 6 : index
    %c0_193 = arith.constant 0 : index
    %c0_194 = arith.constant 0 : index
    %339 = vector.load %arg4[%c1_191, %c6_192, %c0_193, %c0_194] : memref<2x8x14x14xf32, #tpu.memory_space<vmem>>, vector<1x1x14x14xf32>
    %340 = vector.shape_cast %339 : vector<1x1x14x14xf32> to vector<14x14xf32>
    %341 = vector.shape_cast %338 : vector<14x14xf32> to vector<1x1x14x14xf32>
    tpu.vector_store %arg4[%c1_191, %c6_192, %c0_193, %c0_194], %341 {strides = array<i32>} : memref<2x8x14x14xf32, #tpu.memory_space<vmem>>, vector<1x1x14x14xf32>,
    %c0_195 = arith.constant 0 : index
    %c7_196 = arith.constant 7 : index
    %342 = memref.load %arg2[%c0_195, %c7_196] : memref<3x8xf32, #tpu.memory_space<smem>>
    %343 = vector.broadcast %342 : f32 to vector<14x14xf32>
    %344 = arith.mulf %183, %343 : vector<14x14xf32>
    %c7_197 = arith.constant 7 : index
    %345 = memref.load %arg3[%c7_197] : memref<8xf32, #tpu.memory_space<smem>>
    %346 = vector.broadcast %345 : f32 to vector<14x14xf32>
    %347 = arith.addf %344, %346 : vector<14x14xf32>
    %c1_198 = arith.constant 1 : index
    %c7_199 = arith.constant 7 : index
    %348 = memref.load %arg2[%c1_198, %c7_199] : memref<3x8xf32, #tpu.memory_space<smem>>
    %349 = vector.broadcast %348 : f32 to vector<14x14xf32>
    %350 = arith.mulf %185, %349 : vector<14x14xf32>
    %351 = arith.addf %347, %350 : vector<14x14xf32>
    %c2_200 = arith.constant 2 : index
    %c7_201 = arith.constant 7 : index
    %352 = memref.load %arg2[%c2_200, %c7_201] : memref<3x8xf32, #tpu.memory_space<smem>>
    %353 = vector.broadcast %352 : f32 to vector<14x14xf32>
    %354 = arith.mulf %187, %353 : vector<14x14xf32>
    %355 = arith.addf %351, %354 : vector<14x14xf32>
    %356 = arith.negf %355 : vector<14x14xf32>
    %357 = math.exp %356 : vector<14x14xf32>
    %cst_202 = arith.constant 1.000000e+00 : f32
    %358 = vector.broadcast %cst_202 : f32 to vector<14x14xf32>
    %359 = arith.addf %358, %357 : vector<14x14xf32>
    %360 = arith.divf %358, %359 : vector<14x14xf32>
    %c1_203 = arith.constant 1 : index
    %c7_204 = arith.constant 7 : index
    %c0_205 = arith.constant 0 : index
    %c0_206 = arith.constant 0 : index
    %361 = vector.load %arg4[%c1_203, %c7_204, %c0_205, %c0_206] : memref<2x8x14x14xf32, #tpu.memory_space<vmem>>, vector<1x1x14x14xf32>
    %362 = vector.shape_cast %361 : vector<1x1x14x14xf32> to vector<14x14xf32>
    %363 = vector.shape_cast %360 : vector<14x14xf32> to vector<1x1x14x14xf32>
    tpu.vector_store %arg4[%c1_203, %c7_204, %c0_205, %c0_206], %363 {strides = array<i32>} : memref<2x8x14x14xf32, #tpu.memory_space<vmem>>, vector<1x1x14x14xf32>,
    return
  }
  func.func @transform_0(%arg0: i32) -> (i32, i32, i32, i32) {
    %c0_i32 = arith.constant 0 : i32
    %c0_i32_0 = arith.constant 0 : i32
    %c0_i32_1 = arith.constant 0 : i32
    %c0_i32_2 = arith.constant 0 : i32
    return %arg0, %c0_i32, %c0_i32_0, %c0_i32_1 : i32, i32, i32, i32
  }
  func.func @transform_1(%arg0: i32) -> (i32, i32) {
    %c0_i32 = arith.constant 0 : i32
    %c0_i32_0 = arith.constant 0 : i32
    %c0_i32_1 = arith.constant 0 : i32
    return %c0_i32, %c0_i32_0 : i32, i32
  }
  func.func @transform_2(%arg0: i32) -> i32 {
    %c0_i32 = arith.constant 0 : i32
    %c0_i32_0 = arith.constant 0 : i32
    return %c0_i32 : i32
  }
  func.func @transform_3(%arg0: i32) -> (i32, i32, i32, i32) {
    %c0_i32 = arith.constant 0 : i32
    %c0_i32_0 = arith.constant 0 : i32
    %c0_i32_1 = arith.constant 0 : i32
    %c0_i32_2 = arith.constant 0 : i32
    return %arg0, %c0_i32, %c0_i32_0, %c0_i32_1 : i32, i32, i32, i32
  }
}

</mosaic_0001>

<llo_original>
// kernel: tpu_custom_call.1
$region0: #{tpu_custom_call.1}
  #allocation0 [shape = 'u32[]', space=smem, size = 0x4, offset = 0x4, fixed_abs, tag = 'smem constant byte address 0x4 - core index']
  #allocation1 [shape = 'u32[144,128]{1,0:T(1,128)}', space=vmem, size = 0x12000, scoped, tag = 'internal scratch']
  %s0 = inlined_call_operand.hbm [shape: f32[2,3,16,16], index: 0, kind: input, shape index: {}]
  %s1 = inlined_call_operand.hbm [shape: f32[3,8], index: 1, kind: input, shape index: {}]
  %s2 = inlined_call_operand.vmem [shape: f32[8], index: 2, kind: input, shape index: {}]
  %s3 = inlined_call_operand.vmem [shape: f32[2,8,14,14], index: 3, kind: output, shape index: {}]
  %s4 = sld [smem:[#allocation0]]
  $region34: #{tpu_custom_call.1} parent=0
    _
  %s6 = ssub.s32 1, %s4
  %s7 = scalar_select 0, %s6, %s4
  $region1: #{tpu_custom_call.1} parent=0
    #allocation2 [shape = 'u8[49152]{0}', space=vmem, size = 0xc000, scoped, tag = 'input window, operand 0, single buffered']
    #allocation3 [shape = 's32[1]{0}', space=sflag, size = 0x4, scoped, tag = 'scoped memory for tpu_custom_call.1']
    #allocation4 [shape = 's32[1]{0}', space=sflag, size = 0x4, scoped, tag = 'scoped memory for tpu_custom_call.1']
    #allocation5 [shape = 's32[1]{0}', space=sflag, size = 0x4, scoped, tag = 'scoped memory for tpu_custom_call.1']
    #allocation6 [shape = 'u8[2048]{0}', space=smem, size = 0x800, scoped, tag = 'input window, operand 1, single buffered']
    #allocation7 [shape = 'u8[512]{0}', space=smem, size = 0x200, scoped, tag = 'input window, operand 2, single buffered']
    %8 = vsyncpa [#allocation3], 0
    %9 = vsyncpa [#allocation4], 0
    %10 = vsyncpa [#allocation5], 0
    // Predicated region
    $region2: #{tpu_custom_call.1} parent=1 // pred_check
      _
    $region3: #{tpu_custom_call.1} parent=1 // pred_check_branch
      %12 = sbr.rel (0) target = $region5
    $region4: #{tpu_custom_call.1} parent=1 // pred_region
      %s14 = ssub.s32 1536, 1536
      %15 = vsyncadd [#allocation3], %s14
      %s16 = sshll.u32 [#allocation2], 4
      %s17 = int_to_ptr.vmem [resolvable:$true] %s16
      %22 = dma.hbm_to_vmem [thread:$0]  %s0, 1536, %s17, [#allocation3], 128, 128, 8
    $region5: #{tpu_custom_call.1} parent=1 // pred_fallthru
      _
    // Predicated region
    $region6: #{tpu_custom_call.1} parent=1 // pred_check
      _
    $region7: #{tpu_custom_call.1} parent=1 // pred_check_branch
      %24 = sbr.rel (0) target = $region9
    $region8: #{tpu_custom_call.1} parent=1 // pred_region
      %s26 = ssub.s32 64, 64
      %27 = vsyncadd [#allocation4], %s26
      %30 = dma.hbm_to_smem %s1, 64, [#allocation6], [#allocation4]
    $region9: #{tpu_custom_call.1} parent=1 // pred_fallthru
      _
    // Predicated region
    $region10: #{tpu_custom_call.1} parent=1 // pred_check
      _
    $region11: #{tpu_custom_call.1} parent=1 // pred_check_branch
      %32 = sbr.rel (0) target = $region13
    $region12: #{tpu_custom_call.1} parent=1 // pred_region
      %s34 = ssub.s32 16, 16
      %35 = vsyncadd [#allocation5], %s34
      %s37 = sshll.u32 %s2, 4
      %s38 = int_to_ptr.vmem [resolvable:$true] %s37
      %40 = dma.vmem_to_smem %s38, 16, [#allocation7], [#allocation5]
    $region13: #{tpu_custom_call.1} parent=1 // pred_fallthru
      _
    // Predicated region
    $region14: #{tpu_custom_call.1} parent=1 // pred_check
      _
    $region15: #{tpu_custom_call.1} parent=1 // pred_check_branch
      %42 = sbr.rel (0) target = $region17
    $region16: #{tpu_custom_call.1} parent=1 // pred_region
      %43 = dma.done [#allocation3], 1536
    $region17: #{tpu_custom_call.1} parent=1 // pred_fallthru
      _
    // Predicated region
    $region18: #{tpu_custom_call.1} parent=1 // pred_check
      _
    $region19: #{tpu_custom_call.1} parent=1 // pred_check_branch
      %45 = sbr.rel (0) target = $region21
    $region20: #{tpu_custom_call.1} parent=1 // pred_region
      %46 = dma.done [#allocation4], 64
    $region21: #{tpu_custom_call.1} parent=1 // pred_fallthru
      _
    // Predicated region
    $region22: #{tpu_custom_call.1} parent=1 // pred_check
      _
    $region23: #{tpu_custom_call.1} parent=1 // pred_check_branch
      %48 = sbr.rel (0) target = $region25
    $region24: #{tpu_custom_call.1} parent=1 // pred_region
      %49 = dma.done [#allocation5], 16
    $region25: #{tpu_custom_call.1} parent=1 // pred_fallthru
      _
    %50 = sfence
    %v51 = vld [vmem:[#allocation2 + $0x1] sm:$0xff]
    %v52 = vld [vmem:[#allocation2 + $0x9] sm:$0x3f]
    %s53 = scalar_lea.vmem [#allocation2], 16
    %v54 = vld [vmem:[%s53 + $0x1] sm:$0xff]
    %v55 = vld [vmem:[%s53 + $0x9] sm:$0x3f]
    %s56 = scalar_lea.vmem [#allocation2], 32
    %v57 = vld [vmem:[%s56 + $0x1] sm:$0xff]
    %v58 = vld [vmem:[%s56 + $0x9] sm:$0x3f]
    %s59 = sld [smem:[#allocation6]]
    %v60 = vstv %s59
    %v61 = vmul.f32 %v51, %v60
    %v62 = vmul.f32 %v52, %v60
    %s63 = sld [smem:[#allocation7]]
    %v64 = vstv %s63
    %v65 = vadd.f32 %v61, %v64
    %v66 = vadd.f32 %v62, %v64
    %s67 = sld [smem:[#allocation6 + $0x80]]
    %v68 = vstv %s67
    %v69 = vmul.f32 %v54, %v68
    %v70 = vmul.f32 %v55, %v68
    %v71 = vadd.f32 %v65, %v69
    %v72 = vadd.f32 %v66, %v70
    %s73 = sld [smem:[#allocation6 + $0x100]]
    %v74 = vstv %s73
    %v75 = vmul.f32 %v57, %v74
    %v76 = vmul.f32 %v58, %v74
    %v77 = vadd.f32 %v71, %v75
    %v78 = vadd.f32 %v72, %v76
    %v79 = vxor.u32 %v77, 2147483648
    %v80 = vxor.u32 %v78, 2147483648
    %v81 = vmul.f32 %v79, 1.442695
    %v82 = vpow.pop %v81
    %v83 = vmul.f32 %v80, 1.442695
    %v84 = vpow.pop %v83
    %v85 = vadd.f32 %v82, 1.0
    %v86 = vadd.f32 %v84, 1.0
    %v87 = vrcp.pop %v85
    %v88 = vmul.f32 1.0, %v87
    %v89 = vrcp.pop %v86
    %v90 = vmul.f32 1.0, %v89
    %93 = vrot.lane.b32.xlu0 %v88, 127
    %v94 = vpop.permute.xlu0 %93
    %95 = vrot.lane.b32.xlu0 %v90, 127
    %v96 = vpop.permute.xlu0 %95
    %vm99 = vcmask 113664
    %100 = vst.msk [vmem:[%s3] sm:$0xff] %vm99, %v94
    %vm101 = vcmask 111616
    %102 = vst.msk [vmem:[%s3 + $0x8] sm:$0x3f] %vm101, %v96
    %s103 = sld [smem:[#allocation6 + $0x1]]
    %v104 = vstv %s103
    %v105 = vmul.f32 %v51, %v104
    %v106 = vmul.f32 %v52, %v104
    %s107 = sld [smem:[#allocation7 + $0x1]]
    %v108 = vstv %s107
    %v109 = vadd.f32 %v105, %v108
    %v110 = vadd.f32 %v106, %v108
    %s111 = sld [smem:[#allocation6 + $0x81]]
    %v112 = vstv %s111
    %v113 = vmul.f32 %v54, %v112
    %v114 = vmul.f32 %v55, %v112
    %v115 = vadd.f32 %v109, %v113
    %v116 = vadd.f32 %v110, %v114
    %s117 = sld [smem:[#allocation6 + $0x101]]
    %v118 = vstv %s117
    %v119 = vmul.f32 %v57, %v118
    %v120 = vmul.f32 %v58, %v118
    %v121 = vadd.f32 %v115, %v119
    %v122 = vadd.f32 %v116, %v120
    %v123 = vxor.u32 %v121, 2147483648
    %v124 = vxor.u32 %v122, 2147483648
    %v125 = vmul.f32 %v123, 1.442695
    %v126 = vpow.pop %v125
    %v127 = vmul.f32 %v124, 1.442695
    %v128 = vpow.pop %v127
    %v129 = vadd.f32 %v126, 1.0
    %v130 = vadd.f32 %v128, 1.0
    %v131 = vrcp.pop %v129
    %v132 = vmul.f32 1.0, %v131
    %v133 = vrcp.pop %v130
    %v134 = vmul.f32 1.0, %v133
    %137 = vrot.lane.b32.xlu0 %v132, 127
    %v138 = vpop.permute.xlu0 %137
    %139 = vrot.lane.b32.xlu0 %v134, 127
    %v140 = vpop.permute.xlu0 %139
    %s143 = scalar_lea.vmem %s3, 16
    %144 = vst.msk [vmem:[%s143] sm:$0xff] %vm99, %v138
    %145 = vst.msk [vmem:[%s143 + $0x8] sm:$0x3f] %vm101, %v140
    %s146 = sld [smem:[#allocation6 + $0x2]]
    %v147 = vstv %s146
    %v148 = vmul.f32 %v51, %v147
    %v149 = vmul.f32 %v52, %v147
    %s150 = sld [smem:[#allocation7 + $0x2]]
    %v151 = vstv %s150
    %v152 = vadd.f32 %v148, %v151
    %v153 = vadd.f32 %v149, %v151
    %s154 = sld [smem:[#allocation6 + $0x82]]
    %v155 = vstv %s154
    %v156 = vmul.f32 %v54, %v155
    %v157 = vmul.f32 %v55, %v155
    %v158 = vadd.f32 %v152, %v156
    %v159 = vadd.f32 %v153, %v157
    %s160 = sld [smem:[#allocation6 + $0x102]]
    %v161 = vstv %s160
    %v162 = vmul.f32 %v57, %v161
    %v163 = vmul.f32 %v58, %v161
    %v164 = vadd.f32 %v158, %v162
    %v165 = vadd.f32 %v159, %v163
    %v166 = vxor.u32 %v164, 2147483648
    %v167 = vxor.u32 %v165, 2147483648
    %v168 = vmul.f32 %v166, 1.442695
    %v169 = vpow.pop %v168
    %v170 = vmul.f32 %v167, 1.442695
    %v171 = vpow.pop %v170
    %v172 = vadd.f32 %v169, 1.0
    %v173 = vadd.f32 %v171, 1.0
    %v174 = vrcp.pop %v172
    %v175 = vmul.f32 1.0, %v174
    %v176 = vrcp.pop %v173
    %v177 = vmul.f32 1.0, %v176
    %180 = vrot.lane.b32.xlu0 %v175, 127
    %v181 = vpop.permute.xlu0 %180
    %182 = vrot.lane.b32.xlu0 %v177, 127
    %v183 = vpop.permute.xlu0 %182
    %s186 = scalar_lea.vmem %s3, 32
    %187 = vst.msk [vmem:[%s186] sm:$0xff] %vm99, %v181
    %188 = vst.msk [vmem:[%s186 + $0x8] sm:$0x3f] %vm101, %v183
    %s189 = sld [smem:[#allocation6 + $0x3]]
    %v190 = vstv %s189
    %v191 = vmul.f32 %v51, %v190
    %v192 = vmul.f32 %v52, %v190
    %s193 = sld [smem:[#allocation7 + $0x3]]
    %v194 = vstv %s193
    %v195 = vadd.f32 %v191, %v194
    %v196 = vadd.f32 %v192, %v194
    %s197 = sld [smem:[#allocation6 + $0x83]]
    %v198 = vstv %s197
    %v199 = vmul.f32 %v54, %v198
    %v200 = vmul.f32 %v55, %v198
    %v201 = vadd.f32 %v195, %v199
    %v202 = vadd.f32 %v196, %v200
    %s203 = sld [smem:[#allocation6 + $0x103]]
    %v204 = vstv %s203
    %v205 = vmul.f32 %v57, %v204
    %v206 = vmul.f32 %v58, %v204
    %v207 = vadd.f32 %v201, %v205
    %v208 = vadd.f32 %v202, %v206
    %v209 = vxor.u32 %v207, 2147483648
    %v210 = vxor.u32 %v208, 2147483648
    %v211 = vmul.f32 %v209, 1.442695
    %v212 = vpow.pop %v211
    %v213 = vmul.f32 %v210, 1.442695
    %v214 = vpow.pop %v213
    %v215 = vadd.f32 %v212, 1.0
    %v216 = vadd.f32 %v214, 1.0
    %v217 = vrcp.pop %v215
    %v218 = vmul.f32 1.0, %v217
    %v219 = vrcp.pop %v216
    %v220 = vmul.f32 1.0, %v219
    %223 = vrot.lane.b32.xlu0 %v218, 127
    %v224 = vpop.permute.xlu0 %223
    %225 = vrot.lane.b32.xlu0 %v220, 127
    %v226 = vpop.permute.xlu0 %225
    %s229 = scalar_lea.vmem %s3, 48
    %230 = vst.msk [vmem:[%s229] sm:$0xff] %vm99, %v224
    %231 = vst.msk [vmem:[%s229 + $0x8] sm:$0x3f] %vm101, %v226
    %s232 = sld [smem:[#allocation6 + $0x4]]
    %v233 = vstv %s232
    %v234 = vmul.f32 %v51, %v233
    %v235 = vmul.f32 %v52, %v233
    %s236 = sld [smem:[#allocation7 + $0x4]]
    %v237 = vstv %s236
    %v238 = vadd.f32 %v234, %v237
    %v239 = vadd.f32 %v235, %v237
    %s240 = sld [smem:[#allocation6 + $0x84]]
    %v241 = vstv %s240
    %v242 = vmul.f32 %v54, %v241
    %v243 = vmul.f32 %v55, %v241
    %v244 = vadd.f32 %v238, %v242
    %v245 = vadd.f32 %v239, %v243
    %s246 = sld [smem:[#allocation6 + $0x104]]
    %v247 = vstv %s246
    %v248 = vmul.f32 %v57, %v247
    %v249 = vmul.f32 %v58, %v247
    %v250 = vadd.f32 %v244, %v248
    %v251 = vadd.f32 %v245, %v249
    %v252 = vxor.u32 %v250, 2147483648
    %v253 = vxor.u32 %v251, 2147483648
    %v254 = vmul.f32 %v252, 1.442695
    %v255 = vpow.pop %v254
    %v256 = vmul.f32 %v253, 1.442695
    %v257 = vpow.pop %v256
    %v258 = vadd.f32 %v255, 1.0
    %v259 = vadd.f32 %v257, 1.0
    %v260 = vrcp.pop %v258
    %v261 = vmul.f32 1.0, %v260
    %v262 = vrcp.pop %v259
    %v263 = vmul.f32 1.0, %v262
    %266 = vrot.lane.b32.xlu0 %v261, 127
    %v267 = vpop.permute.xlu0 %266
    %268 = vrot.lane.b32.xlu0 %v263, 127
    %v269 = vpop.permute.xlu0 %268
    %s272 = scalar_lea.vmem %s3, 64
    %273 = vst.msk [vmem:[%s272] sm:$0xff] %vm99, %v267
    %274 = vst.msk [vmem:[%s272 + $0x8] sm:$0x3f] %vm101, %v269
    %s275 = sld [smem:[#allocation6 + $0x5]]
    %v276 = vstv %s275
    %v277 = vmul.f32 %v51, %v276
    %v278 = vmul.f32 %v52, %v276
    %s279 = sld [smem:[#allocation7 + $0x5]]
    %v280 = vstv %s279
    %v281 = vadd.f32 %v277, %v280
    %v282 = vadd.f32 %v278, %v280
    %s283 = sld [smem:[#allocation6 + $0x85]]
    %v284 = vstv %s283
    %v285 = vmul.f32 %v54, %v284
    %v286 = vmul.f32 %v55, %v284
    %v287 = vadd.f32 %v281, %v285
    %v288 = vadd.f32 %v282, %v286
    %s289 = sld [smem:[#allocation6 + $0x105]]
    %v290 = vstv %s289
    %v291 = vmul.f32 %v57, %v290
    %v292 = vmul.f32 %v58, %v290
    %v293 = vadd.f32 %v287, %v291
    %v294 = vadd.f32 %v288, %v292
    %v295 = vxor.u32 %v293, 2147483648
    %v296 = vxor.u32 %v294, 2147483648
    %v297 = vmul.f32 %v295, 1.442695
    %v298 = vpow.pop %v297
    %v299 = vmul.f32 %v296, 1.442695
    %v300 = vpow.pop %v299
    %v301 = vadd.f32 %v298, 1.0
    %v302 = vadd.f32 %v300, 1.0
    %v303 = vrcp.pop %v301
    %v304 = vmul.f32 1.0, %v303
    %v305 = vrcp.pop %v302
    %v306 = vmul.f32 1.0, %v305
    %309 = vrot.lane.b32.xlu0 %v304, 127
    %v310 = vpop.permute.xlu0 %309
    %311 = vrot.lane.b32.xlu0 %v306, 127
    %v312 = vpop.permute.xlu0 %311
    %s315 = scalar_lea.vmem %s3, 80
    %316 = vst.msk [vmem:[%s315] sm:$0xff] %vm99, %v310
    %317 = vst.msk [vmem:[%s315 + $0x8] sm:$0x3f] %vm101, %v312
    %s318 = sld [smem:[#allocation6 + $0x6]]
    %v319 = vstv %s318
    %v320 = vmul.f32 %v51, %v319
    %v321 = vmul.f32 %v52, %v319
    %s322 = sld [smem:[#allocation7 + $0x6]]
    %v323 = vstv %s322
    %v324 = vadd.f32 %v320, %v323
    %v325 = vadd.f32 %v321, %v323
    %s326 = sld [smem:[#allocation6 + $0x86]]
    %v327 = vstv %s326
    %v328 = vmul.f32 %v54, %v327
    %v329 = vmul.f32 %v55, %v327
    %v330 = vadd.f32 %v324, %v328
    %v331 = vadd.f32 %v325, %v329
    %s332 = sld [smem:[#allocation6 + $0x106]]
    %v333 = vstv %s332
    %v334 = vmul.f32 %v57, %v333
    %v335 = vmul.f32 %v58, %v333
    %v336 = vadd.f32 %v330, %v334
    %v337 = vadd.f32 %v331, %v335
    %v338 = vxor.u32 %v336, 2147483648
    %v339 = vxor.u32 %v337, 2147483648
    %v340 = vmul.f32 %v338, 1.442695
    %v341 = vpow.pop %v340
    %v342 = vmul.f32 %v339, 1.442695
    %v343 = vpow.pop %v342
    %v344 = vadd.f32 %v341, 1.0
    %v345 = vadd.f32 %v343, 1.0
    %v346 = vrcp.pop %v344
    %v347 = vmul.f32 1.0, %v346
    %v348 = vrcp.pop %v345
    %v349 = vmul.f32 1.0, %v348
    %352 = vrot.lane.b32.xlu0 %v347, 127
    %v353 = vpop.permute.xlu0 %352
    %354 = vrot.lane.b32.xlu0 %v349, 127
    %v355 = vpop.permute.xlu0 %354
    %s358 = scalar_lea.vmem %s3, 96
    %359 = vst.msk [vmem:[%s358] sm:$0xff] %vm99, %v353
    %360 = vst.msk [vmem:[%s358 + $0x8] sm:$0x3f] %vm101, %v355
    %s361 = sld [smem:[#allocation6 + $0x7]]
    %v362 = vstv %s361
    %v363 = vmul.f32 %v51, %v362
    %v364 = vmul.f32 %v52, %v362
    %s365 = sld [smem:[#allocation7 + $0x7]]
    %v366 = vstv %s365
    %v367 = vadd.f32 %v363, %v366
    %v368 = vadd.f32 %v364, %v366
    %s369 = sld [smem:[#allocation6 + $0x87]]
    %v370 = vstv %s369
    %v371 = vmul.f32 %v54, %v370
    %v372 = vmul.f32 %v55, %v370
    %v373 = vadd.f32 %v367, %v371
    %v374 = vadd.f32 %v368, %v372
    %s375 = sld [smem:[#allocation6 + $0x107]]
    %v376 = vstv %s375
    %v377 = vmul.f32 %v57, %v376
    %v378 = vmul.f32 %v58, %v376
    %v379 = vadd.f32 %v373, %v377
    %v380 = vadd.f32 %v374, %v378
    %v381 = vxor.u32 %v379, 2147483648
    %v382 = vxor.u32 %v380, 2147483648
    %v383 = vmul.f32 %v381, 1.442695
    %v384 = vpow.pop %v383
    %v385 = vmul.f32 %v382, 1.442695
    %v386 = vpow.pop %v385
    %v387 = vadd.f32 %v384, 1.0
    %v388 = vadd.f32 %v386, 1.0
    %v389 = vrcp.pop %v387
    %v390 = vmul.f32 1.0, %v389
    %v391 = vrcp.pop %v388
    %v392 = vmul.f32 1.0, %v391
    %395 = vrot.lane.b32.xlu0 %v390, 127
    %v396 = vpop.permute.xlu0 %395
    %397 = vrot.lane.b32.xlu0 %v392, 127
    %v398 = vpop.permute.xlu0 %397
    %s401 = scalar_lea.vmem %s3, 112
    %402 = vst.msk [vmem:[%s401] sm:$0xff] %vm99, %v396
    %403 = vst.msk [vmem:[%s401 + $0x8] sm:$0x3f] %vm101, %v398
    %s404 = scalar_lea.vmem [#allocation2], 48
    %v405 = vld [vmem:[%s404 + $0x1] sm:$0xff]
    %v406 = vld [vmem:[%s404 + $0x9] sm:$0x3f]
    %s407 = scalar_lea.vmem [#allocation2], 64
    %v408 = vld [vmem:[%s407 + $0x1] sm:$0xff]
    %v409 = vld [vmem:[%s407 + $0x9] sm:$0x3f]
    %s410 = scalar_lea.vmem [#allocation2], 80
    %v411 = vld [vmem:[%s410 + $0x1] sm:$0xff]
    %v412 = vld [vmem:[%s410 + $0x9] sm:$0x3f]
    %s413 = sld [smem:[#allocation6]]
    %v414 = vstv %s413
    %v415 = vmul.f32 %v405, %v414
    %v416 = vmul.f32 %v406, %v414
    %s417 = sld [smem:[#allocation7]]
    %v418 = vstv %s417
    %v419 = vadd.f32 %v415, %v418
    %v420 = vadd.f32 %v416, %v418
    %s421 = sld [smem:[#allocation6 + $0x80]]
    %v422 = vstv %s421
    %v423 = vmul.f32 %v408, %v422
    %v424 = vmul.f32 %v409, %v422
    %v425 = vadd.f32 %v419, %v423
    %v426 = vadd.f32 %v420, %v424
    %s427 = sld [smem:[#allocation6 + $0x100]]
    %v428 = vstv %s427
    %v429 = vmul.f32 %v411, %v428
    %v430 = vmul.f32 %v412, %v428
    %v431 = vadd.f32 %v425, %v429
    %v432 = vadd.f32 %v426, %v430
    %v433 = vxor.u32 %v431, 2147483648
    %v434 = vxor.u32 %v432, 2147483648
    %v435 = vmul.f32 %v433, 1.442695
    %v436 = vpow.pop %v435
    %v437 = vmul.f32 %v434, 1.442695
    %v438 = vpow.pop %v437
    %v439 = vadd.f32 %v436, 1.0
    %v440 = vadd.f32 %v438, 1.0
    %v441 = vrcp.pop %v439
    %v442 = vmul.f32 1.0, %v441
    %v443 = vrcp.pop %v440
    %v444 = vmul.f32 1.0, %v443
    %447 = vrot.lane.b32.xlu0 %v442, 127
    %v448 = vpop.permute.xlu0 %447
    %449 = vrot.lane.b32.xlu0 %v444, 127
    %v450 = vpop.permute.xlu0 %449
    %s453 = scalar_lea.vmem %s3, 128
    %454 = vst.msk [vmem:[%s453] sm:$0xff] %vm99, %v448
    %455 = vst.msk [vmem:[%s453 + $0x8] sm:$0x3f] %vm101, %v450
    %s456 = sld [smem:[#allocation6 + $0x1]]
    %v457 = vstv %s456
    %v458 = vmul.f32 %v405, %v457
    %v459 = vmul.f32 %v406, %v457
    %s460 = sld [smem:[#allocation7 + $0x1]]
    %v461 = vstv %s460
    %v462 = vadd.f32 %v458, %v461
    %v463 = vadd.f32 %v459, %v461
    %s464 = sld [smem:[#allocation6 + $0x81]]
    %v465 = vstv %s464
    %v466 = vmul.f32 %v408, %v465
    %v467 = vmul.f32 %v409, %v465
    %v468 = vadd.f32 %v462, %v466
    %v469 = vadd.f32 %v463, %v467
    %s470 = sld [smem:[#allocation6 + $0x101]]
    %v471 = vstv %s470
    %v472 = vmul.f32 %v411, %v471
    %v473 = vmul.f32 %v412, %v471
    %v474 = vadd.f32 %v468, %v472
    %v475 = vadd.f32 %v469, %v473
    %v476 = vxor.u32 %v474, 2147483648
    %v477 = vxor.u32 %v475, 2147483648
    %v478 = vmul.f32 %v476, 1.442695
    %v479 = vpow.pop %v478
    %v480 = vmul.f32 %v477, 1.442695
    %v481 = vpow.pop %v480
    %v482 = vadd.f32 %v479, 1.0
    %v483 = vadd.f32 %v481, 1.0
    %v484 = vrcp.pop %v482
    %v485 = vmul.f32 1.0, %v484
    %v486 = vrcp.pop %v483
    %v487 = vmul.f32 1.0, %v486
    %490 = vrot.lane.b32.xlu0 %v485, 127
    %v491 = vpop.permute.xlu0 %490
    %492 = vrot.lane.b32.xlu0 %v487, 127
    %v493 = vpop.permute.xlu0 %492
    %s496 = scalar_lea.vmem %s3, 144
    %497 = vst.msk [vmem:[%s496] sm:$0xff] %vm99, %v491
    %498 = vst.msk [vmem:[%s496 + $0x8] sm:$0x3f] %vm101, %v493
    %s499 = sld [smem:[#allocation6 + $0x2]]
    %v500 = vstv %s499
    %v501 = vmul.f32 %v405, %v500
    %v502 = vmul.f32 %v406, %v500
    %s503 = sld [smem:[#allocation7 + $0x2]]
    %v504 = vstv %s503
    %v505 = vadd.f32 %v501, %v504
    %v506 = vadd.f32 %v502, %v504
    %s507 = sld [smem:[#allocation6 + $0x82]]
    %v508 = vstv %s507
    %v509 = vmul.f32 %v408, %v508
    %v510 = vmul.f32 %v409, %v508
    %v511 = vadd.f32 %v505, %v509
    %v512 = vadd.f32 %v506, %v510
    %s513 = sld [smem:[#allocation6 + $0x102]]
    %v514 = vstv %s513
    %v515 = vmul.f32 %v411, %v514
    %v516 = vmul.f32 %v412, %v514
    %v517 = vadd.f32 %v511, %v515
    %v518 = vadd.f32 %v512, %v516
    %v519 = vxor.u32 %v517, 2147483648
    %v520 = vxor.u32 %v518, 2147483648
    %v521 = vmul.f32 %v519, 1.442695
    %v522 = vpow.pop %v521
    %v523 = vmul.f32 %v520, 1.442695
    %v524 = vpow.pop %v523
    %v525 = vadd.f32 %v522, 1.0
    %v526 = vadd.f32 %v524, 1.0
    %v527 = vrcp.pop %v525
    %v528 = vmul.f32 1.0, %v527
    %v529 = vrcp.pop %v526
    %v530 = vmul.f32 1.0, %v529
    %533 = vrot.lane.b32.xlu0 %v528, 127
    %v534 = vpop.permute.xlu0 %533
    %535 = vrot.lane.b32.xlu0 %v530, 127
    %v536 = vpop.permute.xlu0 %535
    %s539 = scalar_lea.vmem %s3, 160
    %540 = vst.msk [vmem:[%s539] sm:$0xff] %vm99, %v534
    %541 = vst.msk [vmem:[%s539 + $0x8] sm:$0x3f] %vm101, %v536
    %s542 = sld [smem:[#allocation6 + $0x3]]
    %v543 = vstv %s542
    %v544 = vmul.f32 %v405, %v543
    %v545 = vmul.f32 %v406, %v543
    %s546 = sld [smem:[#allocation7 + $0x3]]
    %v547 = vstv %s546
    %v548 = vadd.f32 %v544, %v547
    %v549 = vadd.f32 %v545, %v547
    %s550 = sld [smem:[#allocation6 + $0x83]]
    %v551 = vstv %s550
    %v552 = vmul.f32 %v408, %v551
    %v553 = vmul.f32 %v409, %v551
    %v554 = vadd.f32 %v548, %v552
    %v555 = vadd.f32 %v549, %v553
    %s556 = sld [smem:[#allocation6 + $0x103]]
    %v557 = vstv %s556
    %v558 = vmul.f32 %v411, %v557
    %v559 = vmul.f32 %v412, %v557
    %v560 = vadd.f32 %v554, %v558
    %v561 = vadd.f32 %v555, %v559
    %v562 = vxor.u32 %v560, 2147483648
    %v563 = vxor.u32 %v561, 2147483648
    %v564 = vmul.f32 %v562, 1.442695
    %v565 = vpow.pop %v564
    %v566 = vmul.f32 %v563, 1.442695
    %v567 = vpow.pop %v566
    %v568 = vadd.f32 %v565, 1.0
    %v569 = vadd.f32 %v567, 1.0
    %v570 = vrcp.pop %v568
    %v571 = vmul.f32 1.0, %v570
    %v572 = vrcp.pop %v569
    %v573 = vmul.f32 1.0, %v572
    %576 = vrot.lane.b32.xlu0 %v571, 127
    %v577 = vpop.permute.xlu0 %576
    %578 = vrot.lane.b32.xlu0 %v573, 127
    %v579 = vpop.permute.xlu0 %578
    %s582 = scalar_lea.vmem %s3, 176
    %583 = vst.msk [vmem:[%s582] sm:$0xff] %vm99, %v577
    %584 = vst.msk [vmem:[%s582 + $0x8] sm:$0x3f] %vm101, %v579
    %s585 = sld [smem:[#allocation6 + $0x4]]
    %v586 = vstv %s585
    %v587 = vmul.f32 %v405, %v586
    %v588 = vmul.f32 %v406, %v586
    %s589 = sld [smem:[#allocation7 + $0x4]]
    %v590 = vstv %s589
    %v591 = vadd.f32 %v587, %v590
    %v592 = vadd.f32 %v588, %v590
    %s593 = sld [smem:[#allocation6 + $0x84]]
    %v594 = vstv %s593
    %v595 = vmul.f32 %v408, %v594
    %v596 = vmul.f32 %v409, %v594
    %v597 = vadd.f32 %v591, %v595
    %v598 = vadd.f32 %v592, %v596
    %s599 = sld [smem:[#allocation6 + $0x104]]
    %v600 = vstv %s599
    %v601 = vmul.f32 %v411, %v600
    %v602 = vmul.f32 %v412, %v600
    %v603 = vadd.f32 %v597, %v601
    %v604 = vadd.f32 %v598, %v602
    %v605 = vxor.u32 %v603, 2147483648
    %v606 = vxor.u32 %v604, 2147483648
    %v607 = vmul.f32 %v605, 1.442695
    %v608 = vpow.pop %v607
    %v609 = vmul.f32 %v606, 1.442695
    %v610 = vpow.pop %v609
    %v611 = vadd.f32 %v608, 1.0
    %v612 = vadd.f32 %v610, 1.0
    %v613 = vrcp.pop %v611
    %v614 = vmul.f32 1.0, %v613
    %v615 = vrcp.pop %v612
    %v616 = vmul.f32 1.0, %v615
    %619 = vrot.lane.b32.xlu0 %v614, 127
    %v620 = vpop.permute.xlu0 %619
    %621 = vrot.lane.b32.xlu0 %v616, 127
    %v622 = vpop.permute.xlu0 %621
    %s625 = scalar_lea.vmem %s3, 192
    %626 = vst.msk [vmem:[%s625] sm:$0xff] %vm99, %v620
    %627 = vst.msk [vmem:[%s625 + $0x8] sm:$0x3f] %vm101, %v622
    %s628 = sld [smem:[#allocation6 + $0x5]]
    %v629 = vstv %s628
    %v630 = vmul.f32 %v405, %v629
    %v631 = vmul.f32 %v406, %v629
    %s632 = sld [smem:[#allocation7 + $0x5]]
    %v633 = vstv %s632
    %v634 = vadd.f32 %v630, %v633
    %v635 = vadd.f32 %v631, %v633
    %s636 = sld [smem:[#allocation6 + $0x85]]
    %v637 = vstv %s636
    %v638 = vmul.f32 %v408, %v637
    %v639 = vmul.f32 %v409, %v637
    %v640 = vadd.f32 %v634, %v638
    %v641 = vadd.f32 %v635, %v639
    %s642 = sld [smem:[#allocation6 + $0x105]]
    %v643 = vstv %s642
    %v644 = vmul.f32 %v411, %v643
    %v645 = vmul.f32 %v412, %v643
    %v646 = vadd.f32 %v640, %v644
    %v647 = vadd.f32 %v641, %v645
    %v648 = vxor.u32 %v646, 2147483648
    %v649 = vxor.u32 %v647, 2147483648
    %v650 = vmul.f32 %v648, 1.442695
    %v651 = vpow.pop %v650
    %v652 = vmul.f32 %v649, 1.442695
    %v653 = vpow.pop %v652
    %v654 = vadd.f32 %v651, 1.0
    %v655 = vadd.f32 %v653, 1.0
    %v656 = vrcp.pop %v654
    %v657 = vmul.f32 1.0, %v656
    %v658 = vrcp.pop %v655
    %v659 = vmul.f32 1.0, %v658
    %662 = vrot.lane.b32.xlu0 %v657, 127
    %v663 = vpop.permute.xlu0 %662
    %664 = vrot.lane.b32.xlu0 %v659, 127
    %v665 = vpop.permute.xlu0 %664
    %s668 = scalar_lea.vmem %s3, 208
    %669 = vst.msk [vmem:[%s668] sm:$0xff] %vm99, %v663
    %670 = vst.msk [vmem:[%s668 + $0x8] sm:$0x3f] %vm101, %v665
    %s671 = sld [smem:[#allocation6 + $0x6]]
    %v672 = vstv %s671
    %v673 = vmul.f32 %v405, %v672
    %v674 = vmul.f32 %v406, %v672
    %s675 = sld [smem:[#allocation7 + $0x6]]
    %v676 = vstv %s675
    %v677 = vadd.f32 %v673, %v676
    %v678 = vadd.f32 %v674, %v676
    %s679 = sld [smem:[#allocation6 + $0x86]]
    %v680 = vstv %s679
    %v681 = vmul.f32 %v408, %v680
    %v682 = vmul.f32 %v409, %v680
    %v683 = vadd.f32 %v677, %v681
    %v684 = vadd.f32 %v678, %v682
    %s685 = sld [smem:[#allocation6 + $0x106]]
    %v686 = vstv %s685
    %v687 = vmul.f32 %v411, %v686
    %v688 = vmul.f32 %v412, %v686
    %v689 = vadd.f32 %v683, %v687
    %v690 = vadd.f32 %v684, %v688
    %v691 = vxor.u32 %v689, 2147483648
    %v692 = vxor.u32 %v690, 2147483648
    %v693 = vmul.f32 %v691, 1.442695
    %v694 = vpow.pop %v693
    %v695 = vmul.f32 %v692, 1.442695
    %v696 = vpow.pop %v695
    %v697 = vadd.f32 %v694, 1.0
    %v698 = vadd.f32 %v696, 1.0
    %v699 = vrcp.pop %v697
    %v700 = vmul.f32 1.0, %v699
    %v701 = vrcp.pop %v698
    %v702 = vmul.f32 1.0, %v701
    %705 = vrot.lane.b32.xlu0 %v700, 127
    %v706 = vpop.permute.xlu0 %705
    %707 = vrot.lane.b32.xlu0 %v702, 127
    %v708 = vpop.permute.xlu0 %707
    %s711 = scalar_lea.vmem %s3, 224
    %712 = vst.msk [vmem:[%s711] sm:$0xff] %vm99, %v706
    %713 = vst.msk [vmem:[%s711 + $0x8] sm:$0x3f] %vm101, %v708
    %s714 = sld [smem:[#allocation6 + $0x7]]
    %v715 = vstv %s714
    %v716 = vmul.f32 %v405, %v715
    %v717 = vmul.f32 %v406, %v715
    %s718 = sld [smem:[#allocation7 + $0x7]]
    %v719 = vstv %s718
    %v720 = vadd.f32 %v716, %v719
    %v721 = vadd.f32 %v717, %v719
    %s722 = sld [smem:[#allocation6 + $0x87]]
    %v723 = vstv %s722
    %v724 = vmul.f32 %v408, %v723
    %v725 = vmul.f32 %v409, %v723
    %v726 = vadd.f32 %v720, %v724
    %v727 = vadd.f32 %v721, %v725
    %s728 = sld [smem:[#allocation6 + $0x107]]
    %v729 = vstv %s728
    %v730 = vmul.f32 %v411, %v729
    %v731 = vmul.f32 %v412, %v729
    %v732 = vadd.f32 %v726, %v730
    %v733 = vadd.f32 %v727, %v731
    %v734 = vxor.u32 %v732, 2147483648
    %v735 = vxor.u32 %v733, 2147483648
    %v736 = vmul.f32 %v734, 1.442695
    %v737 = vpow.pop %v736
    %v738 = vmul.f32 %v735, 1.442695
    %v739 = vpow.pop %v738
    %v740 = vadd.f32 %v737, 1.0
    %v741 = vadd.f32 %v739, 1.0
    %v742 = vrcp.pop %v740
    %v743 = vmul.f32 1.0, %v742
    %v744 = vrcp.pop %v741
    %v745 = vmul.f32 1.0, %v744
    %748 = vrot.lane.b32.xlu0 %v743, 127
    %v749 = vpop.permute.xlu0 %748
    %750 = vrot.lane.b32.xlu0 %v745, 127
    %v751 = vpop.permute.xlu0 %750
    %s754 = scalar_lea.vmem %s3, 240
    %755 = vst.msk [vmem:[%s754] sm:$0xff] %vm99, %v749
    %756 = vst.msk [vmem:[%s754 + $0x8] sm:$0x3f] %vm101, %v751
    // Predicated region
    $region26: #{tpu_custom_call.1} parent=1 // pred_check
      _
    $region27: #{tpu_custom_call.1} parent=1 // pred_check_branch
      %758 = sbr.rel (0) target = $region29
    $region28: #{tpu_custom_call.1} parent=1 // pred_region
      _
    $region29: #{tpu_custom_call.1} parent=1 // pred_fallthru
      _
    // Predicated region
    $region30: #{tpu_custom_call.1} parent=1 // pred_check
      _
    $region31: #{tpu_custom_call.1} parent=1 // pred_check_branch
      %760 = sbr.rel (0) target = $region33
    $region32: #{tpu_custom_call.1} parent=1 // pred_region
      _
    $region33: #{tpu_custom_call.1} parent=1 // pred_fallthru
      _
    %761 = vsyncpa [#allocation3], 1
    %762 = vsyncpa [#allocation4], 1
    %763 = vsyncpa [#allocation5], 1

</llo_original>
